<compile_context>
chip_gen: v5e
topology: v5e:2x2
jax: 0.10.0
libtpu: 0.0.40
codegen_flags: <defaults>
</compile_context>

<pallas_src>
import functools
import math

import jax
import jax.numpy as jnp
from jax.experimental import pallas as pl
from jax.experimental.pallas import tpu as pltpu

_F32 = jnp.float32


# --------------------------------------------------------------------------- kernels
def _gru_step_kernel(enc_ref, emb_ref, h_ref,
                     wte_ref, wtw_ref, bt_ref,
                     wih_ref, bih_ref,
                     whh_ref, bhh_ref,
                     hnew_ref):
    enc = enc_ref[...]
    emb = emb_ref[...]
    h = h_ref[...]
    H = h.shape[-1]

    # transform: Linear(Dh+Dw -> Dh); concat folded into two dots (no wrapper concat).
    x = (jnp.dot(enc, wte_ref[...].astype(_F32), preferred_element_type=_F32)
         + jnp.dot(emb, wtw_ref[...].astype(_F32), preferred_element_type=_F32)
         + bt_ref[...])

    # GRU cell, PyTorch gate order r|z|n (gi/gh kept separate for the n-gate semantics).
    gi = jnp.dot(x, wih_ref[...].astype(_F32), preferred_element_type=_F32) + bih_ref[...]
    gh = jnp.dot(h, whh_ref[...].astype(_F32), preferred_element_type=_F32) + bhh_ref[...]

    r = jax.nn.sigmoid(gi[:, 0:H] + gh[:, 0:H])
    z = jax.nn.sigmoid(gi[:, H:2 * H] + gh[:, H:2 * H])
    n = jnp.tanh(gi[:, 2 * H:3 * H] + r * gh[:, 2 * H:3 * H])
    hnew_ref[...] = ((1.0 - z) * n + z * h).astype(hnew_ref.dtype)


def _vocab_proj_kernel(h_ref, wout_ref, bout_ref, logits_ref):
    # One lane-dense (B, TILE_V) logits tile per grid step; w_out streamed/double-buffered.
    logits_ref[...] = (jnp.dot(h_ref[...], wout_ref[...].astype(_F32),
                               preferred_element_type=_F32)
                       + bout_ref[...]).astype(logits_ref.dtype)


# --------------------------------------------------------------------------- helpers
def _nbytes(shape, dtype):
    return math.prod(shape) * jnp.dtype(dtype).itemsize


def _vmem_limit(nbytes, cap=48 << 20, headroom=8 << 20):
    # Budget from the actual buffers + headroom, capped below v7x's 64 MiB physical VMEM.
    return int(min(cap, nbytes + headroom))


def _pick_tile_v(V, max_tile):
    t = max(128, min(max_tile, V) - (min(max_tile, V) % 128))
    while V % t:
        t -= 128
    return t


# --------------------------------------------------------------------------- forward
@functools.partial(jax.jit, static_argnames=("tile_v",))
def ans_qns_ans_forward(params, encoder_outputs, hidden, ans_idx, *, tile_v=2048):
    """encoder_outputs: (B, Dh) f32; hidden: (1, B, Dh) f32; ans_idx: (B,) int32."""
    # glue: data-dependent embedding row gather (cheap; stays outside the kernel)
    ans_embed = jnp.take(params["embedding"], ans_idx, axis=0).astype(_F32)   # (B, Dw)
    h0 = hidden[0]                                                            # (B, Dh)

    B, Dh = h0.shape
    Dw = ans_embed.shape[-1]
    V = params["w_out"].shape[-1]
    w_dt = params["w_ih"].dtype

    # lane alignment keeps gate slicing free and all stores unmasked
    assert Dh % 128 == 0 and Dw % 128 == 0 and V % 128 == 0

    full = lambda shp: pl.BlockSpec(shp, lambda: tuple(0 for _ in shp))

    # ---- kernel 1: transform + GRU cell (small weights, fully resident) ----
    gru_bytes = 2 * sum((
        _nbytes((B, Dh), _F32), _nbytes((B, Dw), _F32), _nbytes((B, Dh), _F32),
        _nbytes((Dh, Dh), w_dt), _nbytes((Dw, Dh), w_dt), _nbytes((1, Dh), _F32),
        _nbytes((Dh, 3 * Dh), w_dt), _nbytes((1, 3 * Dh), _F32),
        _nbytes((Dh, 3 * Dh), w_dt), _nbytes((1, 3 * Dh), _F32),
        _nbytes((B, Dh), _F32),
    ))
    h_new = pl.pallas_call(
        _gru_step_kernel,
        out_shape=jax.ShapeDtypeStruct((B, Dh), _F32),
        grid=(),
        in_specs=[
            full((B, Dh)), full((B, Dw)), full((B, Dh)),
            full((Dh, Dh)), full((Dw, Dh)), full((1, Dh)),
            full((Dh, 3 * Dh)), full((1, 3 * Dh)),
            full((Dh, 3 * Dh)), full((1, 3 * Dh)),
        ],
        out_specs=full((B, Dh)),
        compiler_params=pltpu.CompilerParams(
            vmem_limit_bytes=_vmem_limit(gru_bytes)),
    )(encoder_outputs, ans_embed, h0,
      params["w_t_enc"], params["w_t_emb"], params["b_t"],
      params["w_ih"], params["b_ih"],
      params["w_hh"], params["b_hh"])

    # ---- kernel 2: output projection; w_out streamed over a parallel vocab grid ----
    tv = _pick_tile_v(V, tile_v)
    n_tiles = V // tv
    proj_bytes = (_nbytes((B, Dh), _F32)                      # h_new resident
                  + 2 * (_nbytes((Dh, tv), w_dt)              # double-buffered stream
                         + _nbytes((1, tv), _F32)
                         + _nbytes((B, tv), _F32)))
    logits = pl.pallas_call(
        _vocab_proj_kernel,
        out_shape=jax.ShapeDtypeStruct((B, V), _F32),
        grid=(n_tiles,),
        in_specs=[
            pl.BlockSpec((B, Dh), lambda j: (0, 0)),     # h_new stays resident in VMEM
            pl.BlockSpec((Dh, tv), lambda j: (0, j)),    # streamed w_out tile
            pl.BlockSpec((1, tv), lambda j: (0, j)),     # streamed bias tile
        ],
        out_specs=pl.BlockSpec((B, tv), lambda j: (0, j)),
        compiler_params=pltpu.CompilerParams(
            dimension_semantics=("parallel",),           # v7x: 2 TCs split the vocab tiles
            vmem_limit_bytes=_vmem_limit(proj_bytes)),
    )(h_new, params["w_out"], params["b_out"])

    return logits, h_new[None]   # hidden back to (1, B, Dh)


# --------------------------------------------------------------------------- params / ref
def _xavier_normal(key, shape):
    fan_in, fan_out = shape
    std = (2.0 / (fan_in + fan_out)) ** 0.5
    return std * jax.random.normal(key, shape, dtype=_F32)


def init_params(key, vocab_size, dim_hidden, dim_word, weight_dtype=jnp.bfloat16):
    ks = jax.random.split(key, 8)
    inv_sqrt_h = 1.0 / (dim_hidden ** 0.5)
    u = lambda k, shp: jax.random.uniform(k, shp, _F32, -inv_sqrt_h, inv_sqrt_h)
    w_t = _xavier_normal(ks[1], (dim_hidden + dim_word, dim_hidden))
    return {
        # synthetic "glove" table (stand-in for np.load(glove_embed)); bf16 weights
        "embedding": (0.1 * jax.random.normal(ks[0], (vocab_size, dim_word),
                                              dtype=_F32)).astype(weight_dtype),
        # transform Linear(Dh+Dw -> Dh), xavier_normal, split so no wrapper concat
        "w_t_enc": w_t[:dim_hidden].astype(weight_dtype),
        "w_t_emb": w_t[dim_hidden:].astype(weight_dtype),
        "b_t": jnp.zeros((1, dim_hidden), _F32),
        # GRU weights (PyTorch default uniform), stored (in, 3H), gate order r|z|n
        "w_ih": u(ks[2], (dim_hidden, 3 * dim_hidden)).astype(weight_dtype),
        "b_ih": u(ks[3], (1, 3 * dim_hidden)),
        "w_hh": u(ks[4], (dim_hidden, 3 * dim_hidden)).astype(weight_dtype),
        "b_hh": u(ks[5], (1, 3 * dim_hidden)),
        # out Linear(Dh -> V), xavier_normal
        "w_out": _xavier_normal(ks[6], (dim_hidden, vocab_size)).astype(weight_dtype),
        "b_out": jnp.zeros((1, vocab_size), _F32),
    }


def _reference_forward(params, encoder_outputs, hidden, ans_idx):
    """Pure-JAX reference mirroring the PyTorch forward at inference (same bf16 weights)."""
    e = jnp.take(params["embedding"], ans_idx, axis=0).astype(_F32)
    h = hidden[0]
    H = h.shape[-1]
    x = (encoder_outputs @ params["w_t_enc"].astype(_F32)
         + e @ params["w_t_emb"].astype(_F32) + params["b_t"])
    gi = x @ params["w_ih"].astype(_F32) + params["b_ih"]
    gh = h @ params["w_hh"].astype(_F32) + params["b_hh"]
    r = jax.nn.sigmoid(gi[:, :H] + gh[:, :H])
    z = jax.nn.sigmoid(gi[:, H:2 * H] + gh[:, H:2 * H])
    n = jnp.tanh(gi[:, 2 * H:] + r * gh[:, 2 * H:])
    h_new = (1.0 - z) * n + z * h
    logits = h_new @ params["w_out"].astype(_F32) + params["b_out"]
    return logits, h_new[None]


if __name__ == "__main__":
    # small, TPU-tile-friendly sizes
    B, dim_hidden, dim_word, vocab_size = 8, 128, 128, 256

    key = jax.random.PRNGKey(0)
    k_param, k_enc, k_hid, k_idx = jax.random.split(key, 4)

    params = init_params(k_param, vocab_size, dim_hidden, dim_word)

    encoder_outputs = jax.random.normal(k_enc, (B, dim_hidden), _F32)
    hidden = jax.random.normal(k_hid, (1, B, dim_hidden), _F32)
    ans_idx = jax.random.randint(k_idx, (B,), 0, vocab_size, jnp.int32)

    # tile_v=128 -> vocab grid of 2 steps so the streamed w_out path is exercised
    logits, h_new = ans_qns_ans_forward(params, encoder_outputs, hidden, ans_idx,
                                        tile_v=128)
    jax.block_until_ready((logits, h_new))

    ref_logits, ref_h = _reference_forward(params, encoder_outputs, hidden, ans_idx)
    assert logits.shape == (B, vocab_size) and h_new.shape == (1, B, dim_hidden)
    assert jnp.allclose(logits, ref_logits, atol=1e-3, rtol=1e-3), \
        float(jnp.max(jnp.abs(logits - ref_logits)))
    assert jnp.allclose(h_new, ref_h, atol=1e-3, rtol=1e-3)

    # TODO(synk): for autoregressive decode (the .sample() loop), fuse T steps into one
    # pallas_call with resident GRU weights + scalar-prefetched token ids.
    print("KERNEL_OK")
</pallas_src>

<mosaic_0001>
module attributes {stable_mosaic.version = 11 : i64} {
  func.func @_vocab_proj_kernel(%arg0: i32, %arg1: memref<8x128xf32, #tpu.memory_space<vmem>>, %arg2: memref<128x128xbf16, #tpu.memory_space<vmem>>, %arg3: memref<1x128xf32, #tpu.memory_space<vmem>>, %arg4: memref<8x128xf32, #tpu.memory_space<vmem>>) attributes {dimension_semantics = [#tpu.dimension_semantics<parallel>], iteration_bounds = array<i64: 2>, scalar_prefetch = 0 : i64, scratch_operands = 0 : i64, tpu.core_type = #tpu.core_type<tc>, window_params = [{pipeline_mode = #tpu.pipeline_mode<synchronous>, transform_indices = @transform_0, window_bounds = array<i64: 8, 128>}, {transform_indices = @transform_1, window_bounds = array<i64: 128, 128>}, {transform_indices = @transform_2, window_bounds = array<i64: 1, 128>}, {transform_indices = @transform_3, window_bounds = array<i64: 8, 128>}]} {
    %c0 = arith.constant 0 : index
    %c0_0 = arith.constant 0 : index
    %0 = vector.load %arg1[%c0, %c0_0] : memref<8x128xf32, #tpu.memory_space<vmem>>, vector<8x128xf32>
    %c0_1 = arith.constant 0 : index
    %c0_2 = arith.constant 0 : index
    %1 = vector.load %arg2[%c0_1, %c0_2] : memref<128x128xbf16, #tpu.memory_space<vmem>>, vector<128x128xbf16>
    %2 = arith.extf %1 : vector<128x128xbf16> to vector<128x128xf32>
    %cst = arith.constant dense<0.000000e+00> : vector<8x128xf32>
    %3 = tpu.matmul %0, %2, %cst {dimension_numbers = #tpu.dot_dimension_numbers<[1], [0], [0], [1], [0, 0, 1, 1], [], []>} : vector<8x128xf32>, vector<128x128xf32>, vector<8x128xf32> -> vector<8x128xf32>
    %c0_3 = arith.constant 0 : index
    %c0_4 = arith.constant 0 : index
    %4 = vector.load %arg3[%c0_3, %c0_4] : memref<1x128xf32, #tpu.memory_space<vmem>>, vector<1x128xf32>
    %5 = vector.broadcast %4 : vector<1x128xf32> to vector<8x128xf32>
    %6 = arith.addf %3, %5 : vector<8x128xf32>
    %c0_5 = arith.constant 0 : index
    %c0_6 = arith.constant 0 : index
    %7 = vector.load %arg4[%c0_5, %c0_6] : memref<8x128xf32, #tpu.memory_space<vmem>>, vector<8x128xf32>
    tpu.vector_store %arg4[%c0_5, %c0_6], %6 {strides = array<i32>} : memref<8x128xf32, #tpu.memory_space<vmem>>, vector<8x128xf32>,
    return
  }
  func.func @transform_0(%arg0: i32) -> (i32, i32) {
    %c0_i32 = arith.constant 0 : i32
    %c0_i32_0 = arith.constant 0 : i32
    %c0_i32_1 = arith.constant 0 : i32
    return %c0_i32, %c0_i32_0 : i32, i32
  }
  func.func @transform_1(%arg0: i32) -> (i32, i32) {
    %c0_i32 = arith.constant 0 : i32
    %c0_i32_0 = arith.constant 0 : i32
    return %c0_i32, %arg0 : i32, i32
  }
  func.func @transform_2(%arg0: i32) -> (i32, i32) {
    %c0_i32 = arith.constant 0 : i32
    %c0_i32_0 = arith.constant 0 : i32
    return %c0_i32, %arg0 : i32, i32
  }
  func.func @transform_3(%arg0: i32) -> (i32, i32) {
    %c0_i32 = arith.constant 0 : i32
    %c0_i32_0 = arith.constant 0 : i32
    return %c0_i32, %arg0 : i32, i32
  }
}

module attributes {stable_mosaic.version = 11 : i64} {
  func.func @_gru_step_kernel(%arg0: memref<8x128xf32, #tpu.memory_space<vmem>>, %arg1: memref<8x128xf32, #tpu.memory_space<vmem>>, %arg2: memref<8x128xf32, #tpu.memory_space<vmem>>, %arg3: memref<128x128xbf16, #tpu.memory_space<vmem>>, %arg4: memref<128x128xbf16, #tpu.memory_space<vmem>>, %arg5: memref<1x128xf32, #tpu.memory_space<vmem>>, %arg6: memref<128x384xbf16, #tpu.memory_space<vmem>>, %arg7: memref<1x384xf32, #tpu.memory_space<vmem>>, %arg8: memref<128x384xbf16, #tpu.memory_space<vmem>>, %arg9: memref<1x384xf32, #tpu.memory_space<vmem>>, %arg10: memref<8x128xf32, #tpu.memory_space<vmem>>) attributes {dimension_semantics = [], scalar_prefetch = 0 : i64, scratch_operands = 0 : i64, tpu.core_type = #tpu.core_type<tc>} {
    %c0 = arith.constant 0 : index
    %c0_0 = arith.constant 0 : index
    %0 = vector.load %arg0[%c0, %c0_0] : memref<8x128xf32, #tpu.memory_space<vmem>>, vector<8x128xf32>
    %c0_1 = arith.constant 0 : index
    %c0_2 = arith.constant 0 : index
    %1 = vector.load %arg1[%c0_1, %c0_2] : memref<8x128xf32, #tpu.memory_space<vmem>>, vector<8x128xf32>
    %c0_3 = arith.constant 0 : index
    %c0_4 = arith.constant 0 : index
    %2 = vector.load %arg2[%c0_3, %c0_4] : memref<8x128xf32, #tpu.memory_space<vmem>>, vector<8x128xf32>
    %c0_5 = arith.constant 0 : index
    %c0_6 = arith.constant 0 : index
    %3 = vector.load %arg3[%c0_5, %c0_6] : memref<128x128xbf16, #tpu.memory_space<vmem>>, vector<128x128xbf16>
    %4 = arith.extf %3 : vector<128x128xbf16> to vector<128x128xf32>
    %cst = arith.constant dense<0.000000e+00> : vector<8x128xf32>
    %5 = tpu.matmul %0, %4, %cst {dimension_numbers = #tpu.dot_dimension_numbers<[1], [0], [0], [1], [0, 0, 1, 1], [], []>} : vector<8x128xf32>, vector<128x128xf32>, vector<8x128xf32> -> vector<8x128xf32>
    %c0_7 = arith.constant 0 : index
    %c0_8 = arith.constant 0 : index
    %6 = vector.load %arg4[%c0_7, %c0_8] : memref<128x128xbf16, #tpu.memory_space<vmem>>, vector<128x128xbf16>
    %7 = arith.extf %6 : vector<128x128xbf16> to vector<128x128xf32>
    %cst_9 = arith.constant dense<0.000000e+00> : vector<8x128xf32>
    %8 = tpu.matmul %1, %7, %cst_9 {dimension_numbers = #tpu.dot_dimension_numbers<[1], [0], [0], [1], [0, 0, 1, 1], [], []>} : vector<8x128xf32>, vector<128x128xf32>, vector<8x128xf32> -> vector<8x128xf32>
    %9 = arith.addf %5, %8 : vector<8x128xf32>
    %c0_10 = arith.constant 0 : index
    %c0_11 = arith.constant 0 : index
    %10 = vector.load %arg5[%c0_10, %c0_11] : memref<1x128xf32, #tpu.memory_space<vmem>>, vector<1x128xf32>
    %11 = vector.broadcast %10 : vector<1x128xf32> to vector<8x128xf32>
    %12 = arith.addf %9, %11 : vector<8x128xf32>
    %c0_12 = arith.constant 0 : index
    %c0_13 = arith.constant 0 : index
    %13 = vector.load %arg6[%c0_12, %c0_13] : memref<128x384xbf16, #tpu.memory_space<vmem>>, vector<128x384xbf16>
    %14 = arith.extf %13 : vector<128x384xbf16> to vector<128x384xf32>
    %cst_14 = arith.constant dense<0.000000e+00> : vector<8x384xf32>
    %15 = tpu.matmul %12, %14, %cst_14 {dimension_numbers = #tpu.dot_dimension_numbers<[1], [0], [0], [1], [0, 0, 1, 1], [], []>} : vector<8x128xf32>, vector<128x384xf32>, vector<8x384xf32> -> vector<8x384xf32>
    %c0_15 = arith.constant 0 : index
    %c0_16 = arith.constant 0 : index
    %16 = vector.load %arg7[%c0_15, %c0_16] : memref<1x384xf32, #tpu.memory_space<vmem>>, vector<1x384xf32>
    %17 = vector.broadcast %16 : vector<1x384xf32> to vector<8x384xf32>
    %18 = arith.addf %15, %17 : vector<8x384xf32>
    %c0_17 = arith.constant 0 : index
    %c0_18 = arith.constant 0 : index
    %19 = vector.load %arg8[%c0_17, %c0_18] : memref<128x384xbf16, #tpu.memory_space<vmem>>, vector<128x384xbf16>
    %20 = arith.extf %19 : vector<128x384xbf16> to vector<128x384xf32>
    %cst_19 = arith.constant dense<0.000000e+00> : vector<8x384xf32>
    %21 = tpu.matmul %2, %20, %cst_19 {dimension_numbers = #tpu.dot_dimension_numbers<[1], [0], [0], [1], [0, 0, 1, 1], [], []>} : vector<8x128xf32>, vector<128x384xf32>, vector<8x384xf32> -> vector<8x384xf32>
    %c0_20 = arith.constant 0 : index
    %c0_21 = arith.constant 0 : index
    %22 = vector.load %arg9[%c0_20, %c0_21] : memref<1x384xf32, #tpu.memory_space<vmem>>, vector<1x384xf32>
    %23 = vector.broadcast %22 : vector<1x384xf32> to vector<8x384xf32>
    %24 = arith.addf %21, %23 : vector<8x384xf32>
    %25 = vector.extract_strided_slice %18 {offsets = [0, 0], sizes = [8, 128], strides = [1, 1]} : vector<8x384xf32> to vector<8x128xf32>
    %26 = vector.extract_strided_slice %24 {offsets = [0, 0], sizes = [8, 128], strides = [1, 1]} : vector<8x384xf32> to vector<8x128xf32>
    %27 = arith.addf %25, %26 : vector<8x128xf32>
    %28 = arith.negf %27 : vector<8x128xf32>
    %29 = math.exp %28 : vector<8x128xf32>
    %cst_22 = arith.constant 1.000000e+00 : f32
    %30 = vector.broadcast %cst_22 : f32 to vector<8x128xf32>
    %31 = arith.addf %30, %29 : vector<8x128xf32>
    %32 = arith.divf %30, %31 : vector<8x128xf32>
    %33 = vector.extract_strided_slice %18 {offsets = [0, 128], sizes = [8, 128], strides = [1, 1]} : vector<8x384xf32> to vector<8x128xf32>
    %34 = vector.extract_strided_slice %24 {offsets = [0, 128], sizes = [8, 128], strides = [1, 1]} : vector<8x384xf32> to vector<8x128xf32>
    %35 = arith.addf %33, %34 : vector<8x128xf32>
    %36 = arith.negf %35 : vector<8x128xf32>
    %37 = math.exp %36 : vector<8x128xf32>
    %cst_23 = arith.constant 1.000000e+00 : f32
    %38 = vector.broadcast %cst_23 : f32 to vector<8x128xf32>
    %39 = arith.addf %38, %37 : vector<8x128xf32>
    %40 = arith.divf %38, %39 : vector<8x128xf32>
    %41 = vector.extract_strided_slice %18 {offsets = [0, 256], sizes = [8, 128], strides = [1, 1]} : vector<8x384xf32> to vector<8x128xf32>
    %42 = vector.extract_strided_slice %24 {offsets = [0, 256], sizes = [8, 128], strides = [1, 1]} : vector<8x384xf32> to vector<8x128xf32>
    %43 = arith.mulf %32, %42 : vector<8x128xf32>
    %44 = arith.addf %41, %43 : vector<8x128xf32>
    %45 = math.tanh %44 : vector<8x128xf32>
    %cst_24 = arith.constant 1.000000e+00 : f32
    %46 = vector.broadcast %cst_24 : f32 to vector<8x128xf32>
    %47 = arith.subf %46, %40 : vector<8x128xf32>
    %48 = arith.mulf %47, %45 : vector<8x128xf32>
    %49 = arith.mulf %40, %2 : vector<8x128xf32>
    %50 = arith.addf %48, %49 : vector<8x128xf32>
    %c0_25 = arith.constant 0 : index
    %c0_26 = arith.constant 0 : index
    %51 = vector.load %arg10[%c0_25, %c0_26] : memref<8x128xf32, #tpu.memory_space<vmem>>, vector<8x128xf32>
    tpu.vector_store %arg10[%c0_25, %c0_26], %50 {strides = array<i32>} : memref<8x128xf32, #tpu.memory_space<vmem>>, vector<8x128xf32>,
    return
  }
}

</mosaic_0001>

<llo_original>
// kernel: ans_qns_ans_forward.3
$region0: #{ans_qns_ans_forward.3}
  #allocation0 [shape = 'u32[]', space=smem, size = 0x4, offset = 0x4, fixed_abs, tag = 'smem constant byte address 0x4 - core index']
  #allocation1 [shape = 'u32[72,128]{1,0:T(1,128)}', space=vmem, size = 0x9000, scoped, tag = 'internal scratch']
  %s0 = inlined_call_operand.vmem [shape: f32[8,128], index: 0, kind: input, shape index: {}]
  %s1 = inlined_call_operand.hbm [shape: bf16[128,256], index: 1, kind: input, shape index: {}]
  %s2 = inlined_call_operand.vmem [shape: f32[1,256], index: 2, kind: input, shape index: {}]
  %s3 = inlined_call_operand.hbm [shape: f32[8,256], index: 3, kind: output, shape index: {}]
  %s4 = sld [smem:[#allocation0]]
  $region49: #{ans_qns_ans_forward.3} parent=0
    _
  %s6 = ssub.s32 1, %s4
  %s7 = scalar_select 0, %s6, %s4
  $region1: #{ans_qns_ans_forward.3} parent=0
    #allocation2 [shape = 'u8[65536]{0}', space=vmem, size = 0x10000, scoped, tag = 'input window, operand 1']
    #allocation3 [shape = 's32[2]{0}', space=sflag, size = 0x8, scoped, tag = 'scoped memory for ans_qns_ans_forward.3']
    #allocation4 [shape = 's32[2]{0}', space=sflag, size = 0x8, scoped, tag = 'scoped memory for ans_qns_ans_forward.3']
    #allocation5 [shape = 'u8[8192]{0}', space=vmem, size = 0x2000, scoped, tag = 'output window, operand 0']
    %8 = vsyncpa [#allocation3], 0
    %s9 = scalar_lea.sflag [#allocation3], 1
    %10 = vsyncpa %s9, 0
    %11 = vsyncpa [#allocation4], 0
    %s12 = scalar_lea.sflag [#allocation4], 1
    %13 = vsyncpa %s12, 0
    loop: start=0, step=1, limit=4
    $region2: #{ans_qns_ans_forward.3} parent=1 // loop_pre_header
      _
    $region3: #{ans_qns_ans_forward.3} parent=1 // loop_header
      %s15 = sphi 0, %s19
      %p16 = scmp.ge.s32.totalorder %s15, 4
      %s23 = sphi 0, %s23
      %s25 = sphi 0, %s23
      %s26 = sphi 0, %s25
      %s40 = sphi 0, %s26
      %s46 = sphi 0, %s48
      %s49 = sphi 0, %s46
      %s50 = sphi 0, %s49
      %s66 = sphi 0, %s50
      %s72 = sphi 0, %s74
      %s75 = sphi 0, %s72
      %s76 = sphi 0, %s75
      %s92 = sphi 0, %s76
      %s98 = sphi 0, %s100
      %s101 = sphi 0, %s98
      %s102 = sphi 0, %s101
      %s118 = sphi 0, %s102
    $region4: #{ans_qns_ans_forward.3} parent=1 // loop_header_branch
      %18 = sbr.rel (%p16) target = $region8
    $region5: #{ans_qns_ans_forward.3} parent=1 // loop_body
      %s20 = ssub.s32 %s15, 1
      %s21 = ssub.s32 %s15, 2
      %s22 = sadd.s32 %s15, 1
      %s24 = sadd.s32 %s23, 1
      %p27 = scmp.eq.s32.totalorder %s15, 1
      %p28 = scmp.ne.s32.totalorder %s23, %s25
      %p29 = scmp.eq.s32.totalorder %s15, 0
      %p30 = por %p28, %p29
      %p31 = scmp.ne.s32.totalorder %s23, %s25
      %p32 = scmp.eq.s32.totalorder %s20, 1
      %p33 = por %p31, %p32
      %p34 = scmp.ne.s32.totalorder %s25, %s26
      %p35 = scmp.eq.s32.totalorder %s20, 0
      %p36 = por %p34, %p35
      %p37 = scmp.ne.s32.totalorder %s25, %s26
      %p38 = scmp.eq.s32.totalorder %s21, 1
      %p39 = por %p37, %p38
      %p41 = scmp.ne.s32.totalorder %s26, %s40
      %p42 = scmp.eq.s32.totalorder %s21, 0
      %p43 = por %p41, %p42
      %s44 = ssub.s32 %s15, %s22
      %p45 = scmp.eq.s32.totalorder %s44, 0
      %s47 = sadd.s32 %s46, 1
      %s48 = scalar_select %p45, %s46, %s47
      %p51 = pneg %p45
      %p52 = scmp.eq.s32.totalorder %s15, 1
      %p53 = por %p51, %p52
      %p54 = scmp.ne.s32.totalorder %s46, %s49
      %p55 = scmp.eq.s32.totalorder %s15, 0
      %p56 = por %p54, %p55
      %p57 = scmp.ne.s32.totalorder %s46, %s49
      %p58 = scmp.eq.s32.totalorder %s20, 1
      %p59 = por %p57, %p58
      %p60 = scmp.ne.s32.totalorder %s49, %s50
      %p61 = scmp.eq.s32.totalorder %s20, 0
      %p62 = por %p60, %p61
      %p63 = scmp.ne.s32.totalorder %s49, %s50
      %p64 = scmp.eq.s32.totalorder %s21, 1
      %p65 = por %p63, %p64
      %p67 = scmp.ne.s32.totalorder %s50, %s66
      %p68 = scmp.eq.s32.totalorder %s21, 0
      %p69 = por %p67, %p68
      %s70 = ssub.s32 %s15, %s22
      %p71 = scmp.eq.s32.totalorder %s70, 0
      %s73 = sadd.s32 %s72, 1
      %s74 = scalar_select %p71, %s72, %s73
      %p77 = pneg %p71
      %p78 = scmp.eq.s32.totalorder %s15, 1
      %p79 = por %p77, %p78
      %p80 = scmp.ne.s32.totalorder %s72, %s75
      %p81 = scmp.eq.s32.totalorder %s15, 0
      %p82 = por %p80, %p81
      %p83 = scmp.ne.s32.totalorder %s72, %s75
      %p84 = scmp.eq.s32.totalorder %s20, 1
      %p85 = por %p83, %p84
      %p86 = scmp.ne.s32.totalorder %s75, %s76
      %p87 = scmp.eq.s32.totalorder %s20, 0
      %p88 = por %p86, %p87
      %p89 = scmp.ne.s32.totalorder %s75, %s76
      %p90 = scmp.eq.s32.totalorder %s21, 1
      %p91 = por %p89, %p90
      %p93 = scmp.ne.s32.totalorder %s76, %s92
      %p94 = scmp.eq.s32.totalorder %s21, 0
      %p95 = por %p93, %p94
      %s96 = ssub.s32 %s15, %s22
      %p97 = scmp.eq.s32.totalorder %s96, 0
      %s99 = sadd.s32 %s98, 1
      %s100 = scalar_select %p97, %s98, %s99
      %p103 = pneg %p97
      %p104 = scmp.eq.s32.totalorder %s15, 1
      %p105 = por %p103, %p104
      %p106 = scmp.ne.s32.totalorder %s98, %s101
      %p107 = scmp.eq.s32.totalorder %s15, 0
      %p108 = por %p106, %p107
      %p109 = scmp.ne.s32.totalorder %s98, %s101
      %p110 = scmp.eq.s32.totalorder %s20, 1
      %p111 = por %p109, %p110
      %p112 = scmp.ne.s32.totalorder %s101, %s102
      %p113 = scmp.eq.s32.totalorder %s20, 0
      %p114 = por %p112, %p113
      %p115 = scmp.ne.s32.totalorder %s101, %s102
      %p116 = scmp.eq.s32.totalorder %s21, 1
      %p117 = por %p115, %p116
      %p119 = scmp.ne.s32.totalorder %s102, %s118
      %p120 = scmp.eq.s32.totalorder %s21, 0
      %p121 = por %p119, %p120
      %p122 = scmp.le.s32.totalorder 1, %s15
      %p123 = scmp.lt.s32.totalorder %s15, 3
      %p124 = pnand %p122, %p123
      %p125 = pneg %p124
      // Predicated region
      $region9: #{ans_qns_ans_forward.3} parent=5 // pred_check
        _
      $region10: #{ans_qns_ans_forward.3} parent=5 // pred_check_branch
        %127 = sbr.rel (%p124) target = $region12
      $region11: #{ans_qns_ans_forward.3} parent=5 // pred_region
        %s128 = ssub.s32 %s15, 1
        // Predicated region
        $region13: #{ans_qns_ans_forward.3} parent=11 // pred_check
          %p129 = pneg %p36
        $region14: #{ans_qns_ans_forward.3} parent=11 // pred_check_branch
          %131 = sbr.rel (%p129) target = $region16
        $region15: #{ans_qns_ans_forward.3} parent=11 // pred_region
          _
        $region16: #{ans_qns_ans_forward.3} parent=11 // pred_fallthru
          _
      $region12: #{ans_qns_ans_forward.3} parent=5 // pred_fallthru
        _
      %p132 = scmp.lt.s32.totalorder %s15, 2
      // Predicated region
      $region17: #{ans_qns_ans_forward.3} parent=5 // pred_check
        %p133 = pneg %p132
      $region18: #{ans_qns_ans_forward.3} parent=5 // pred_check_branch
        %135 = sbr.rel (%p133) target = $region20
      $region19: #{ans_qns_ans_forward.3} parent=5 // pred_region
        // Predicated region
        $region21: #{ans_qns_ans_forward.3} parent=19 // pred_check
          %p136 = pneg %p56
        $region22: #{ans_qns_ans_forward.3} parent=19 // pred_check_branch
          %138 = sbr.rel (%p136) target = $region24
        $region23: #{ans_qns_ans_forward.3} parent=19 // pred_region
          %s139 = sand.u32 %s46, 1
          %s140 = scalar_lea.sflag [#allocation3], %s139
          %s141 = sand.u32 %s46, 1
          %s142 = smul.addr %s141, 64
          %s143 = scalar_lea.vmem [#allocation2], %s142
          %145 = vsyncadd %s140, 0
          %s146 = smul.addr %s15, 4
          %s147 = scalar_lea.hbm %s1, %s146
          %s148 = sshll.u32 %s147, 4
          %s149 = int_to_ptr.hbm [resolvable:$true] %s148
          %s150 = sshll.u32 %s143, 4
          %s151 = int_to_ptr.vmem [resolvable:$true] %s150
          %156 = dma.hbm_to_vmem [thread:$0]  %s149, 1024, %s151, %s140, 128, 64, 4
        $region24: #{ans_qns_ans_forward.3} parent=19 // pred_fallthru
          _
        // Predicated region
        $region25: #{ans_qns_ans_forward.3} parent=19 // pred_check
          %p157 = pneg %p82
        $region26: #{ans_qns_ans_forward.3} parent=19 // pred_check_branch
          %159 = sbr.rel (%p157) target = $region28
        $region27: #{ans_qns_ans_forward.3} parent=19 // pred_region
          %p160 = scmp.lt.s32.totalorder %s15, 1
          %s161 = scalar_select %p160, %s15, 1
          %s162 = scalar_lea.vmem %s2, %s161
        $region28: #{ans_qns_ans_forward.3} parent=19 // pred_fallthru
          _
      $region20: #{ans_qns_ans_forward.3} parent=5 // pred_fallthru
        _
      %p163 = scmp.le.s32.totalorder 1, %s15
      %p164 = scmp.lt.s32.totalorder %s15, 3
      %p165 = pnand %p163, %p164
      %p166 = pneg %p165
      // Predicated region
      $region29: #{ans_qns_ans_forward.3} parent=5 // pred_check
        _
      $region30: #{ans_qns_ans_forward.3} parent=5 // pred_check_branch
        %168 = sbr.rel (%p165) target = $region32
      $region31: #{ans_qns_ans_forward.3} parent=5 // pred_region
        %s169 = ssub.s32 %s15, 1
        %s170 = sand.u32 %s49, 1
        %s171 = scalar_lea.sflag [#allocation3], %s170
        %s172 = sand.u32 %s49, 1
        %s173 = smul.addr %s172, 64
        %s174 = scalar_lea.vmem [#allocation2], %s173
        // Predicated region
        $region33: #{ans_qns_ans_forward.3} parent=31 // pred_check
          %p175 = pneg %p62
        $region34: #{ans_qns_ans_forward.3} parent=31 // pred_check_branch
          %177 = sbr.rel (%p175) target = $region36
        $region35: #{ans_qns_ans_forward.3} parent=31 // pred_region
          %179 = dma.done %s171, 1024
        $region36: #{ans_qns_ans_forward.3} parent=31 // pred_fallthru
          _
        %p180 = pneg %p36
        %p181 = pneg %p33
        %s182 = sand.u32 %s49, 1
        %s183 = scalar_lea.sflag [#allocation3], %s182
        %s184 = sand.u32 %s49, 1
        %s185 = smul.addr %s184, 64
        %s186 = scalar_lea.vmem [#allocation2], %s185
        %p187 = pneg %p62
        %p188 = pneg %p59
        %p189 = scmp.lt.s32.totalorder %s20, 1
        %s190 = scalar_select %p189, %s20, 1
        %s191 = scalar_lea.vmem %s2, %s190
        %p192 = pneg %p88
        %p193 = pneg %p85
        %p194 = pneg %p114
        %p195 = pneg %p111
        %s196 = sand.u32 %s101, 1
        %s197 = scalar_lea.sflag [#allocation4], %s196
        %s198 = sand.u32 %s101, 1
        %s199 = smul.addr %s198, 8
        %s200 = scalar_lea.vmem [#allocation5], %s199
        %p201 = scmp.lt.s32.totalorder %s20, 1
        %s202 = scalar_select %p201, %s20, 1
        %s203 = scalar_lea.vmem %s2, %s202
        %v204 = vld [vmem:[%s0] sm:$0xff]
        %v205 = vld [vmem:[%s174] sm:$0xf]
        %v206 = vld [vmem:[%s174 + $0x4] sm:$0xf]
        %v207 = vld [vmem:[%s174 + $0x8] sm:$0xf]
        %v208 = vld [vmem:[%s174 + $0xc] sm:$0xf]
        %v209 = vld [vmem:[%s174 + $0x10] sm:$0xf]
        %v210 = vld [vmem:[%s174 + $0x14] sm:$0xf]
        %v211 = vld [vmem:[%s174 + $0x18] sm:$0xf]
        %v212 = vld [vmem:[%s174 + $0x1c] sm:$0xf]
        %v213 = vld [vmem:[%s174 + $0x20] sm:$0xf]
        %v214 = vld [vmem:[%s174 + $0x24] sm:$0xf]
        %v215 = vld [vmem:[%s174 + $0x28] sm:$0xf]
        %v216 = vld [vmem:[%s174 + $0x2c] sm:$0xf]
        %v217 = vld [vmem:[%s174 + $0x30] sm:$0xf]
        %v218 = vld [vmem:[%s174 + $0x34] sm:$0xf]
        %v219 = vld [vmem:[%s174 + $0x38] sm:$0xf]
        %v220 = vld [vmem:[%s174 + $0x3c] sm:$0xf]
        %v221 = vunpack.c.l.bf16 %v205
        %v222 = vunpack.c.l.bf16 %v206
        %v223 = vunpack.c.l.bf16 %v207
        %v224 = vunpack.c.l.bf16 %v208
        %v225 = vunpack.c.l.bf16 %v209
        %v226 = vunpack.c.l.bf16 %v210
        %v227 = vunpack.c.l.bf16 %v211
        %v228 = vunpack.c.l.bf16 %v212
        %v229 = vunpack.c.l.bf16 %v213
        %v230 = vunpack.c.l.bf16 %v214
        %v231 = vunpack.c.l.bf16 %v215
        %v232 = vunpack.c.l.bf16 %v216
        %v233 = vunpack.c.l.bf16 %v217
        %v234 = vunpack.c.l.bf16 %v218
        %v235 = vunpack.c.l.bf16 %v219
        %v236 = vunpack.c.l.bf16 %v220
        %v237 = vld [vmem:[%s203] sm:$0x1]
        %v239 = vperm.slane %v237, 0
        %241 = vmatpush.msra.mxu0 %v236
        %242 = vmatpush.msra.mxu0 %v235
        %243 = vmatpush.msra.mxu0 %v234
        %244 = vmatpush.msra.mxu0 %v233
        %245 = vmatpush.msra.mxu0 %v232
        %246 = vmatpush.msra.mxu0 %v231
        %247 = vmatpush.msra.mxu0 %v230
        %248 = vmatpush.msra.mxu0 %v229
        %249 = vmatpush.msra.mxu0 %v228
        %250 = vmatpush.msra.mxu0 %v227
        %251 = vmatpush.msra.mxu0 %v226
        %252 = vmatpush.msra.mxu0 %v225
        %253 = vmatpush.msra.mxu0 %v224
        %254 = vmatpush.msra.mxu0 %v223
        %255 = vmatpush.msra.mxu0 %v222
        %256 = vmatpush.msra.mxu0 %v221
        %257 = vmatmul.f32.gmra.mxu0 %v204
        %v258 = vpop.f32.mrf.mxu0
        %v259 = vadd.f32 %v239, %v258
        %260 = vdwg.mxu0
        %261 = vst [vmem:[%s200] sm:$0xff] %v259
        %s262 = sand.u32 %s101, 1
        %s263 = scalar_lea.sflag [#allocation4], %s262
        %s264 = sand.u32 %s101, 1
        %s265 = smul.addr %s264, 8
        %s266 = scalar_lea.vmem [#allocation5], %s265
        // Predicated region
        $region37: #{ans_qns_ans_forward.3} parent=31 // pred_check
          %p267 = pneg %p111
        $region38: #{ans_qns_ans_forward.3} parent=31 // pred_check_branch
          %269 = sbr.rel (%p267) target = $region40
        $region39: #{ans_qns_ans_forward.3} parent=31 // pred_region
          %271 = vsyncadd %s263, 0
          %s272 = smul.addr %s20, 8
          %s273 = scalar_lea.hbm %s3, %s272
          %s275 = sshll.u32 %s266, 4
          %s276 = int_to_ptr.vmem [resolvable:$true] %s275
          %s277 = sshll.u32 %s273, 4
          %s278 = int_to_ptr.hbm [resolvable:$true] %s277
          %280 = dma.vmem_to_hbm [thread:$0]  %s276, 128, %s278, %s263
        $region40: #{ans_qns_ans_forward.3} parent=31 // pred_fallthru
          _
      $region32: #{ans_qns_ans_forward.3} parent=5 // pred_fallthru
        _
      %p281 = scmp.le.s32.totalorder 2, %s15
      // Predicated region
      $region41: #{ans_qns_ans_forward.3} parent=5 // pred_check
        %p282 = pneg %p281
      $region42: #{ans_qns_ans_forward.3} parent=5 // pred_check_branch
        %284 = sbr.rel (%p282) target = $region44
      $region43: #{ans_qns_ans_forward.3} parent=5 // pred_region
        %s285 = ssub.s32 %s15, 2
        // Predicated region
        $region45: #{ans_qns_ans_forward.3} parent=43 // pred_check
          %p286 = pneg %p117
        $region46: #{ans_qns_ans_forward.3} parent=43 // pred_check_branch
          %288 = sbr.rel (%p286) target = $region48
        $region47: #{ans_qns_ans_forward.3} parent=43 // pred_region
          %s289 = sand.u32 %s102, 1
          %s290 = scalar_lea.sflag [#allocation4], %s289
          %s291 = sand.u32 %s102, 1
          %s292 = smul.addr %s291, 8
          %s293 = scalar_lea.vmem [#allocation5], %s292
          %295 = dma.done %s290, 128
        $region48: #{ans_qns_ans_forward.3} parent=43 // pred_fallthru
          _
      $region44: #{ans_qns_ans_forward.3} parent=5 // pred_fallthru
        _
    $region6: #{ans_qns_ans_forward.3} parent=1 // loop_footer
      %s19 = sadd.s32 1, %s15
    $region7: #{ans_qns_ans_forward.3} parent=1 // loop_footer_branch
      %14 = sbr.rel target = $region3
    $region8: #{ans_qns_ans_forward.3} parent=1 // loop_exit
      _
    %296 = vsyncpa [#allocation3], 1
    %s297 = scalar_lea.sflag [#allocation3], 1
    %298 = vsyncpa %s297, 1
    %299 = vsyncpa [#allocation4], 1
    %s300 = scalar_lea.sflag [#allocation4], 1
    %301 = vsyncpa %s300, 1

// kernel: ans_qns_ans_forward.2
$region0: #{ans_qns_ans_forward.2}
  #allocation0 [shape = 'u32[]', space=smem, size = 0x4, offset = 0x4, fixed_abs, tag = 'smem constant byte address 0x4 - core index']
  #allocation1 [shape = 'u32[72,128]{1,0:T(1,128)}', space=vmem, size = 0x9000, scoped, tag = 'internal scratch']
  %s0 = inlined_call_operand.vmem [shape: f32[8,128], index: 0, kind: input, shape index: {}]
  %s1 = inlined_call_operand.vmem [shape: f32[8,128], index: 1, kind: input, shape index: {}]
  %s2 = inlined_call_operand.vmem [shape: f32[8,128], index: 2, kind: input, shape index: {}]
  %s3 = inlined_call_operand.hbm [shape: bf16[128,128], index: 3, kind: input, shape index: {}]
  %s4 = inlined_call_operand.hbm [shape: bf16[128,128], index: 4, kind: input, shape index: {}]
  %s5 = inlined_call_operand.vmem [shape: f32[1,128], index: 5, kind: input, shape index: {}]
  %s6 = inlined_call_operand.hbm [shape: bf16[128,384], index: 6, kind: input, shape index: {}]
  %s7 = inlined_call_operand.vmem [shape: f32[1,384], index: 7, kind: input, shape index: {}]
  %s8 = inlined_call_operand.hbm [shape: bf16[128,384], index: 8, kind: input, shape index: {}]
  %s9 = inlined_call_operand.vmem [shape: f32[1,384], index: 9, kind: input, shape index: {}]
  %s10 = inlined_call_operand.vmem [shape: f32[8,128], index: 10, kind: output, shape index: {}]
  %s11 = sld [smem:[#allocation0]]
  $region66: #{ans_qns_ans_forward.2} parent=0
    _
  %s13 = ssub.s32 1, %s11
  %s14 = scalar_select 0, %s13, %s11
  $region1: #{ans_qns_ans_forward.2} parent=0
    #allocation2 [shape = 'u8[32768]{0}', space=vmem, size = 0x8000, scoped, tag = 'input window, operand 3, single buffered']
    #allocation3 [shape = 's32[1]{0}', space=sflag, size = 0x4, scoped, tag = 'scoped memory for ans_qns_ans_forward.2']
    #allocation4 [shape = 'u8[32768]{0}', space=vmem, size = 0x8000, scoped, tag = 'input window, operand 4, single buffered']
    #allocation5 [shape = 's32[1]{0}', space=sflag, size = 0x4, scoped, tag = 'scoped memory for ans_qns_ans_forward.2']
    #allocation6 [shape = 'u8[98304]{0}', space=vmem, size = 0x18000, scoped, tag = 'input window, operand 6, single buffered']
    #allocation7 [shape = 'u8[98304]{0}', space=vmem, size = 0x18000, scoped, tag = 'input window, operand 8, single buffered']
    #allocation8 [shape = 's32[1]{0}', space=sflag, size = 0x4, scoped, tag = 'scoped memory for ans_qns_ans_forward.2']
    %15 = vsyncpa [#allocation3], 0
    %16 = vsyncpa [#allocation5], 0
    %17 = vsyncpa [#allocation8], 0
    // Predicated region
    $region2: #{ans_qns_ans_forward.2} parent=1 // pred_check
      _
    $region3: #{ans_qns_ans_forward.2} parent=1 // pred_check_branch
      %19 = sbr.rel (0) target = $region5
    $region4: #{ans_qns_ans_forward.2} parent=1 // pred_region
      _
    $region5: #{ans_qns_ans_forward.2} parent=1 // pred_fallthru
      _
    // Predicated region
    $region6: #{ans_qns_ans_forward.2} parent=1 // pred_check
      _
    $region7: #{ans_qns_ans_forward.2} parent=1 // pred_check_branch
      %21 = sbr.rel (0) target = $region9
    $region8: #{ans_qns_ans_forward.2} parent=1 // pred_region
      _
    $region9: #{ans_qns_ans_forward.2} parent=1 // pred_fallthru
      _
    // Predicated region
    $region10: #{ans_qns_ans_forward.2} parent=1 // pred_check
      _
    $region11: #{ans_qns_ans_forward.2} parent=1 // pred_check_branch
      %23 = sbr.rel (0) target = $region13
    $region12: #{ans_qns_ans_forward.2} parent=1 // pred_region
      _
    $region13: #{ans_qns_ans_forward.2} parent=1 // pred_fallthru
      _
    // Predicated region
    $region14: #{ans_qns_ans_forward.2} parent=1 // pred_check
      _
    $region15: #{ans_qns_ans_forward.2} parent=1 // pred_check_branch
      %25 = sbr.rel (0) target = $region17
    $region16: #{ans_qns_ans_forward.2} parent=1 // pred_region
      %27 = vsyncadd [#allocation3], 0
      %s28 = sshll.u32 %s3, 4
      %s29 = int_to_ptr.hbm [resolvable:$true] %s28
      %s30 = sshll.u32 [#allocation2], 4
      %s31 = int_to_ptr.vmem [resolvable:$true] %s30
      %36 = dma.hbm_to_vmem [thread:$0]  %s29, 1024, %s31, [#allocation3], 64, 64, 4
    $region17: #{ans_qns_ans_forward.2} parent=1 // pred_fallthru
      _
    // Predicated region
    $region18: #{ans_qns_ans_forward.2} parent=1 // pred_check
      _
    $region19: #{ans_qns_ans_forward.2} parent=1 // pred_check_branch
      %38 = sbr.rel (0) target = $region21
    $region20: #{ans_qns_ans_forward.2} parent=1 // pred_region
      %40 = vsyncadd [#allocation5], 0
      %s41 = sshll.u32 %s4, 4
      %s42 = int_to_ptr.hbm [resolvable:$true] %s41
      %s43 = sshll.u32 [#allocation4], 4
      %s44 = int_to_ptr.vmem [resolvable:$true] %s43
      %49 = dma.hbm_to_vmem [thread:$0]  %s42, 1024, %s44, [#allocation5], 64, 64, 4
    $region21: #{ans_qns_ans_forward.2} parent=1 // pred_fallthru
      _
    // Predicated region
    $region22: #{ans_qns_ans_forward.2} parent=1 // pred_check
      _
    $region23: #{ans_qns_ans_forward.2} parent=1 // pred_check_branch
      %51 = sbr.rel (0) target = $region25
    $region24: #{ans_qns_ans_forward.2} parent=1 // pred_region
      _
    $region25: #{ans_qns_ans_forward.2} parent=1 // pred_fallthru
      _
    // Predicated region
    $region26: #{ans_qns_ans_forward.2} parent=1 // pred_check
      _
    $region27: #{ans_qns_ans_forward.2} parent=1 // pred_check_branch
      %53 = sbr.rel (0) target = $region29
    $region28: #{ans_qns_ans_forward.2} parent=1 // pred_region
      %55 = vsyncadd [#allocation5], 0
      %s56 = sshll.u32 %s6, 4
      %s57 = int_to_ptr.hbm [resolvable:$true] %s56
      %s58 = sshll.u32 [#allocation6], 4
      %s59 = int_to_ptr.vmem [resolvable:$true] %s58
      %64 = dma.hbm_to_vmem [thread:$0]  %s57, 3072, %s59, [#allocation5], 192, 192, 12
    $region29: #{ans_qns_ans_forward.2} parent=1 // pred_fallthru
      _
    // Predicated region
    $region30: #{ans_qns_ans_forward.2} parent=1 // pred_check
      _
    $region31: #{ans_qns_ans_forward.2} parent=1 // pred_check_branch
      %66 = sbr.rel (0) target = $region33
    $region32: #{ans_qns_ans_forward.2} parent=1 // pred_region
      _
    $region33: #{ans_qns_ans_forward.2} parent=1 // pred_fallthru
      _
    // Predicated region
    $region34: #{ans_qns_ans_forward.2} parent=1 // pred_check
      _
    $region35: #{ans_qns_ans_forward.2} parent=1 // pred_check_branch
      %68 = sbr.rel (0) target = $region37
    $region36: #{ans_qns_ans_forward.2} parent=1 // pred_region
      %70 = vsyncadd [#allocation8], 0
      %s71 = sshll.u32 %s8, 4
      %s72 = int_to_ptr.hbm [resolvable:$true] %s71
      %s73 = sshll.u32 [#allocation7], 4
      %s74 = int_to_ptr.vmem [resolvable:$true] %s73
      %79 = dma.hbm_to_vmem [thread:$0]  %s72, 3072, %s74, [#allocation8], 192, 192, 12
    $region37: #{ans_qns_ans_forward.2} parent=1 // pred_fallthru
      _
    // Predicated region
    $region38: #{ans_qns_ans_forward.2} parent=1 // pred_check
      _
    $region39: #{ans_qns_ans_forward.2} parent=1 // pred_check_branch
      %81 = sbr.rel (0) target = $region41
    $region40: #{ans_qns_ans_forward.2} parent=1 // pred_region
      _
    $region41: #{ans_qns_ans_forward.2} parent=1 // pred_fallthru
      _
    // Predicated region
    $region42: #{ans_qns_ans_forward.2} parent=1 // pred_check
      _
    $region43: #{ans_qns_ans_forward.2} parent=1 // pred_check_branch
      %83 = sbr.rel (0) target = $region45
    $region44: #{ans_qns_ans_forward.2} parent=1 // pred_region
      %85 = dma.done [#allocation3], 1024
    $region45: #{ans_qns_ans_forward.2} parent=1 // pred_fallthru
      _
    // Predicated region
    $region46: #{ans_qns_ans_forward.2} parent=1 // pred_check
      _
    $region47: #{ans_qns_ans_forward.2} parent=1 // pred_check_branch
      %87 = sbr.rel (0) target = $region49
    $region48: #{ans_qns_ans_forward.2} parent=1 // pred_region
      %89 = dma.done [#allocation5], 1024
    $region49: #{ans_qns_ans_forward.2} parent=1 // pred_fallthru
      _
    // Predicated region
    $region50: #{ans_qns_ans_forward.2} parent=1 // pred_check
      _
    $region51: #{ans_qns_ans_forward.2} parent=1 // pred_check_branch
      %91 = sbr.rel (0) target = $region53
    $region52: #{ans_qns_ans_forward.2} parent=1 // pred_region
      %93 = dma.done [#allocation5], 3072
    $region53: #{ans_qns_ans_forward.2} parent=1 // pred_fallthru
      _
    // Predicated region
    $region54: #{ans_qns_ans_forward.2} parent=1 // pred_check
      _
    $region55: #{ans_qns_ans_forward.2} parent=1 // pred_check_branch
      %95 = sbr.rel (0) target = $region57
    $region56: #{ans_qns_ans_forward.2} parent=1 // pred_region
      %97 = dma.done [#allocation8], 3072
    $region57: #{ans_qns_ans_forward.2} parent=1 // pred_fallthru
      _
    %v98 = vld [vmem:[%s0] sm:$0xff]
    %v99 = vld [vmem:[%s1] sm:$0xff]
    %v100 = vld [vmem:[%s2] sm:$0xff]
    %v101 = vld [vmem:[#allocation2] sm:$0xf]
    %v102 = vld [vmem:[#allocation2 + $0x4] sm:$0xf]
    %v103 = vld [vmem:[#allocation2 + $0x8] sm:$0xf]
    %v104 = vld [vmem:[#allocation2 + $0xc] sm:$0xf]
    %v105 = vld [vmem:[#allocation2 + $0x10] sm:$0xf]
    %v106 = vld [vmem:[#allocation2 + $0x14] sm:$0xf]
    %v107 = vld [vmem:[#allocation2 + $0x18] sm:$0xf]
    %v108 = vld [vmem:[#allocation2 + $0x1c] sm:$0xf]
    %v109 = vld [vmem:[#allocation2 + $0x20] sm:$0xf]
    %v110 = vld [vmem:[#allocation2 + $0x24] sm:$0xf]
    %v111 = vld [vmem:[#allocation2 + $0x28] sm:$0xf]
    %v112 = vld [vmem:[#allocation2 + $0x2c] sm:$0xf]
    %v113 = vld [vmem:[#allocation2 + $0x30] sm:$0xf]
    %v114 = vld [vmem:[#allocation2 + $0x34] sm:$0xf]
    %v115 = vld [vmem:[#allocation2 + $0x38] sm:$0xf]
    %v116 = vld [vmem:[#allocation2 + $0x3c] sm:$0xf]
    %v117 = vunpack.c.l.bf16 %v101
    %v118 = vunpack.c.l.bf16 %v102
    %v119 = vunpack.c.l.bf16 %v103
    %v120 = vunpack.c.l.bf16 %v104
    %v121 = vunpack.c.l.bf16 %v105
    %v122 = vunpack.c.l.bf16 %v106
    %v123 = vunpack.c.l.bf16 %v107
    %v124 = vunpack.c.l.bf16 %v108
    %v125 = vunpack.c.l.bf16 %v109
    %v126 = vunpack.c.l.bf16 %v110
    %v127 = vunpack.c.l.bf16 %v111
    %v128 = vunpack.c.l.bf16 %v112
    %v129 = vunpack.c.l.bf16 %v113
    %v130 = vunpack.c.l.bf16 %v114
    %v131 = vunpack.c.l.bf16 %v115
    %v132 = vunpack.c.l.bf16 %v116
    %v133 = vld [vmem:[#allocation4] sm:$0xf]
    %v134 = vld [vmem:[#allocation4 + $0x4] sm:$0xf]
    %v135 = vld [vmem:[#allocation4 + $0x8] sm:$0xf]
    %v136 = vld [vmem:[#allocation4 + $0xc] sm:$0xf]
    %v137 = vld [vmem:[#allocation4 + $0x10] sm:$0xf]
    %v138 = vld [vmem:[#allocation4 + $0x14] sm:$0xf]
    %v139 = vld [vmem:[#allocation4 + $0x18] sm:$0xf]
    %v140 = vld [vmem:[#allocation4 + $0x1c] sm:$0xf]
    %v141 = vld [vmem:[#allocation4 + $0x20] sm:$0xf]
    %v142 = vld [vmem:[#allocation4 + $0x24] sm:$0xf]
    %v143 = vld [vmem:[#allocation4 + $0x28] sm:$0xf]
    %v144 = vld [vmem:[#allocation4 + $0x2c] sm:$0xf]
    %v145 = vld [vmem:[#allocation4 + $0x30] sm:$0xf]
    %v146 = vld [vmem:[#allocation4 + $0x34] sm:$0xf]
    %v147 = vld [vmem:[#allocation4 + $0x38] sm:$0xf]
    %v148 = vld [vmem:[#allocation4 + $0x3c] sm:$0xf]
    %v149 = vunpack.c.l.bf16 %v133
    %v150 = vunpack.c.l.bf16 %v134
    %v151 = vunpack.c.l.bf16 %v135
    %v152 = vunpack.c.l.bf16 %v136
    %v153 = vunpack.c.l.bf16 %v137
    %v154 = vunpack.c.l.bf16 %v138
    %v155 = vunpack.c.l.bf16 %v139
    %v156 = vunpack.c.l.bf16 %v140
    %v157 = vunpack.c.l.bf16 %v141
    %v158 = vunpack.c.l.bf16 %v142
    %v159 = vunpack.c.l.bf16 %v143
    %v160 = vunpack.c.l.bf16 %v144
    %v161 = vunpack.c.l.bf16 %v145
    %v162 = vunpack.c.l.bf16 %v146
    %v163 = vunpack.c.l.bf16 %v147
    %v164 = vunpack.c.l.bf16 %v148
    %165 = vmatpush.msra.mxu0 %v164
    %166 = vmatpush.msra.mxu0 %v163
    %167 = vmatpush.msra.mxu0 %v162
    %168 = vmatpush.msra.mxu0 %v161
    %169 = vmatpush.msra.mxu0 %v160
    %170 = vmatpush.msra.mxu0 %v159
    %171 = vmatpush.msra.mxu0 %v158
    %172 = vmatpush.msra.mxu0 %v157
    %173 = vmatpush.msra.mxu0 %v156
    %174 = vmatpush.msra.mxu0 %v155
    %175 = vmatpush.msra.mxu0 %v154
    %176 = vmatpush.msra.mxu0 %v153
    %177 = vmatpush.msra.mxu0 %v152
    %178 = vmatpush.msra.mxu0 %v151
    %179 = vmatpush.msra.mxu0 %v150
    %180 = vmatpush.msra.mxu0 %v149
    %181 = vmatmul.f32.gmra.mxu0 %v99
    %v182 = vpop.f32.mrf.mxu0
    %v183 = vadd.f32 0.0, %v182
    %184 = vdwg.mxu0
    %185 = vmatpush.msra.mxu0 %v132
    %186 = vmatpush.msra.mxu0 %v131
    %187 = vmatpush.msra.mxu0 %v130
    %188 = vmatpush.msra.mxu0 %v129
    %189 = vmatpush.msra.mxu0 %v128
    %190 = vmatpush.msra.mxu0 %v127
    %191 = vmatpush.msra.mxu0 %v126
    %192 = vmatpush.msra.mxu0 %v125
    %193 = vmatpush.msra.mxu0 %v124
    %194 = vmatpush.msra.mxu0 %v123
    %195 = vmatpush.msra.mxu0 %v122
    %196 = vmatpush.msra.mxu0 %v121
    %197 = vmatpush.msra.mxu0 %v120
    %198 = vmatpush.msra.mxu0 %v119
    %199 = vmatpush.msra.mxu0 %v118
    %200 = vmatpush.msra.mxu0 %v117
    %201 = vmatmul.f32.gmra.mxu0 %v98
    %v202 = vpop.f32.mrf.mxu0
    %v203 = vadd.f32 %v183, %v202
    %204 = vdwg.mxu0
    %v205 = vld [vmem:[%s5] sm:$0x1]
    %v207 = vperm.slane %v205, 0
    %v209 = vadd.f32 %v203, %v207
    %v210 = vld [vmem:[#allocation6] sm:$0xff]
    %v211 = vld [vmem:[#allocation6 + $0x8] sm:$0xf]
    %v212 = vld [vmem:[#allocation6 + $0xc] sm:$0xff]
    %v213 = vld [vmem:[#allocation6 + $0x14] sm:$0xf]
    %v214 = vld [vmem:[#allocation6 + $0x18] sm:$0xff]
    %v215 = vld [vmem:[#allocation6 + $0x20] sm:$0xf]
    %v216 = vld [vmem:[#allocation6 + $0x24] sm:$0xff]
    %v217 = vld [vmem:[#allocation6 + $0x2c] sm:$0xf]
    %v218 = vld [vmem:[#allocation6 + $0x30] sm:$0xff]
    %v219 = vld [vmem:[#allocation6 + $0x38] sm:$0xf]
    %v220 = vld [vmem:[#allocation6 + $0x3c] sm:$0xff]
    %v221 = vld [vmem:[#allocation6 + $0x44] sm:$0xf]
    %v222 = vld [vmem:[#allocation6 + $0x48] sm:$0xff]
    %v223 = vld [vmem:[#allocation6 + $0x50] sm:$0xf]
    %v224 = vld [vmem:[#allocation6 + $0x54] sm:$0xff]
    %v225 = vld [vmem:[#allocation6 + $0x5c] sm:$0xf]
    %v226 = vld [vmem:[#allocation6 + $0x60] sm:$0xff]
    %v227 = vld [vmem:[#allocation6 + $0x68] sm:$0xf]
    %v228 = vld [vmem:[#allocation6 + $0x6c] sm:$0xff]
    %v229 = vld [vmem:[#allocation6 + $0x74] sm:$0xf]
    %v230 = vld [vmem:[#allocation6 + $0x78] sm:$0xff]
    %v231 = vld [vmem:[#allocation6 + $0x80] sm:$0xf]
    %v232 = vld [vmem:[#allocation6 + $0x84] sm:$0xff]
    %v233 = vld [vmem:[#allocation6 + $0x8c] sm:$0xf]
    %v234 = vld [vmem:[#allocation6 + $0x90] sm:$0xff]
    %v235 = vld [vmem:[#allocation6 + $0x98] sm:$0xf]
    %v236 = vld [vmem:[#allocation6 + $0x9c] sm:$0xff]
    %v237 = vld [vmem:[#allocation6 + $0xa4] sm:$0xf]
    %v238 = vld [vmem:[#allocation6 + $0xa8] sm:$0xff]
    %v239 = vld [vmem:[#allocation6 + $0xb0] sm:$0xf]
    %v240 = vld [vmem:[#allocation6 + $0xb4] sm:$0xff]
    %v241 = vld [vmem:[#allocation6 + $0xbc] sm:$0xf]
    %v242 = vunpack.c.l.bf16 %v210
    %v243 = vunpack.c.h.bf16 %v210
    %v244 = vunpack.c.l.bf16 %v211
    %v245 = vunpack.c.l.bf16 %v212
    %v246 = vunpack.c.h.bf16 %v212
    %v247 = vunpack.c.l.bf16 %v213
    %v248 = vunpack.c.l.bf16 %v214
    %v249 = vunpack.c.h.bf16 %v214
    %v250 = vunpack.c.l.bf16 %v215
    %v251 = vunpack.c.l.bf16 %v216
    %v252 = vunpack.c.h.bf16 %v216
    %v253 = vunpack.c.l.bf16 %v217
    %v254 = vunpack.c.l.bf16 %v218
    %v255 = vunpack.c.h.bf16 %v218
    %v256 = vunpack.c.l.bf16 %v219
    %v257 = vunpack.c.l.bf16 %v220
    %v258 = vunpack.c.h.bf16 %v220
    %v259 = vunpack.c.l.bf16 %v221
    %v260 = vunpack.c.l.bf16 %v222
    %v261 = vunpack.c.h.bf16 %v222
    %v262 = vunpack.c.l.bf16 %v223
    %v263 = vunpack.c.l.bf16 %v224
    %v264 = vunpack.c.h.bf16 %v224
    %v265 = vunpack.c.l.bf16 %v225
    %v266 = vunpack.c.l.bf16 %v226
    %v267 = vunpack.c.h.bf16 %v226
    %v268 = vunpack.c.l.bf16 %v227
    %v269 = vunpack.c.l.bf16 %v228
    %v270 = vunpack.c.h.bf16 %v228
    %v271 = vunpack.c.l.bf16 %v229
    %v272 = vunpack.c.l.bf16 %v230
    %v273 = vunpack.c.h.bf16 %v230
    %v274 = vunpack.c.l.bf16 %v231
    %v275 = vunpack.c.l.bf16 %v232
    %v276 = vunpack.c.h.bf16 %v232
    %v277 = vunpack.c.l.bf16 %v233
    %v278 = vunpack.c.l.bf16 %v234
    %v279 = vunpack.c.h.bf16 %v234
    %v280 = vunpack.c.l.bf16 %v235
    %v281 = vunpack.c.l.bf16 %v236
    %v282 = vunpack.c.h.bf16 %v236
    %v283 = vunpack.c.l.bf16 %v237
    %v284 = vunpack.c.l.bf16 %v238
    %v285 = vunpack.c.h.bf16 %v238
    %v286 = vunpack.c.l.bf16 %v239
    %v287 = vunpack.c.l.bf16 %v240
    %v288 = vunpack.c.h.bf16 %v240
    %v289 = vunpack.c.l.bf16 %v241
    %v290 = vld [vmem:[%s7] sm:$0x7]
    %v292 = vperm.slane %v290, 0
    %v293 = vperm.slane %v290, 1
    %v294 = vperm.slane %v290, 2
    %298 = vmatpush.msra.mxu0 %v287
    %299 = vmatpush.msra.mxu0 %v284
    %300 = vmatpush.msra.mxu0 %v281
    %301 = vmatpush.msra.mxu0 %v278
    %302 = vmatpush.msra.mxu0 %v275
    %303 = vmatpush.msra.mxu0 %v272
    %304 = vmatpush.msra.mxu0 %v269
    %305 = vmatpush.msra.mxu0 %v266
    %306 = vmatpush.msra.mxu0 %v263
    %307 = vmatpush.msra.mxu0 %v260
    %308 = vmatpush.msra.mxu0 %v257
    %309 = vmatpush.msra.mxu0 %v254
    %310 = vmatpush.msra.mxu0 %v251
    %311 = vmatpush.msra.mxu0 %v248
    %312 = vmatpush.msra.mxu0 %v245
    %313 = vmatpush.msra.mxu0 %v242
    %314 = vmatmul.f32.gmra.mxu0 %v209
    %v315 = vpop.f32.mrf.mxu0
    %v316 = vadd.f32 %v292, %v315
    %317 = vdwg.mxu0
    %318 = vmatpush.msra.mxu0 %v288
    %319 = vmatpush.msra.mxu0 %v285
    %320 = vmatpush.msra.mxu0 %v282
    %321 = vmatpush.msra.mxu0 %v279
    %322 = vmatpush.msra.mxu0 %v276
    %323 = vmatpush.msra.mxu0 %v273
    %324 = vmatpush.msra.mxu0 %v270
    %325 = vmatpush.msra.mxu0 %v267
    %326 = vmatpush.msra.mxu0 %v264
    %327 = vmatpush.msra.mxu0 %v261
    %328 = vmatpush.msra.mxu0 %v258
    %329 = vmatpush.msra.mxu0 %v255
    %330 = vmatpush.msra.mxu0 %v252
    %331 = vmatpush.msra.mxu0 %v249
    %332 = vmatpush.msra.mxu0 %v246
    %333 = vmatpush.msra.mxu0 %v243
    %334 = vmatmul.f32.gmra.mxu0 %v209
    %v335 = vpop.f32.mrf.mxu0
    %v336 = vadd.f32 %v293, %v335
    %337 = vdwg.mxu0
    %338 = vmatpush.msra.mxu0 %v289
    %339 = vmatpush.msra.mxu0 %v286
    %340 = vmatpush.msra.mxu0 %v283
    %341 = vmatpush.msra.mxu0 %v280
    %342 = vmatpush.msra.mxu0 %v277
    %343 = vmatpush.msra.mxu0 %v274
    %344 = vmatpush.msra.mxu0 %v271
    %345 = vmatpush.msra.mxu0 %v268
    %346 = vmatpush.msra.mxu0 %v265
    %347 = vmatpush.msra.mxu0 %v262
    %348 = vmatpush.msra.mxu0 %v259
    %349 = vmatpush.msra.mxu0 %v256
    %350 = vmatpush.msra.mxu0 %v253
    %351 = vmatpush.msra.mxu0 %v250
    %352 = vmatpush.msra.mxu0 %v247
    %353 = vmatpush.msra.mxu0 %v244
    %354 = vmatmul.f32.gmra.mxu0 %v209
    %v355 = vpop.f32.mrf.mxu0
    %v356 = vadd.f32 %v294, %v355
    %357 = vdwg.mxu0
    %v358 = vld [vmem:[#allocation7] sm:$0xff]
    %v359 = vld [vmem:[#allocation7 + $0x8] sm:$0xf]
    %v360 = vld [vmem:[#allocation7 + $0xc] sm:$0xff]
    %v361 = vld [vmem:[#allocation7 + $0x14] sm:$0xf]
    %v362 = vld [vmem:[#allocation7 + $0x18] sm:$0xff]
    %v363 = vld [vmem:[#allocation7 + $0x20] sm:$0xf]
    %v364 = vld [vmem:[#allocation7 + $0x24] sm:$0xff]
    %v365 = vld [vmem:[#allocation7 + $0x2c] sm:$0xf]
    %v366 = vld [vmem:[#allocation7 + $0x30] sm:$0xff]
    %v367 = vld [vmem:[#allocation7 + $0x38] sm:$0xf]
    %v368 = vld [vmem:[#allocation7 + $0x3c] sm:$0xff]
    %v369 = vld [vmem:[#allocation7 + $0x44] sm:$0xf]
    %v370 = vld [vmem:[#allocation7 + $0x48] sm:$0xff]
    %v371 = vld [vmem:[#allocation7 + $0x50] sm:$0xf]
    %v372 = vld [vmem:[#allocation7 + $0x54] sm:$0xff]
    %v373 = vld [vmem:[#allocation7 + $0x5c] sm:$0xf]
    %v374 = vld [vmem:[#allocation7 + $0x60] sm:$0xff]
    %v375 = vld [vmem:[#allocation7 + $0x68] sm:$0xf]
    %v376 = vld [vmem:[#allocation7 + $0x6c] sm:$0xff]
    %v377 = vld [vmem:[#allocation7 + $0x74] sm:$0xf]
    %v378 = vld [vmem:[#allocation7 + $0x78] sm:$0xff]
    %v379 = vld [vmem:[#allocation7 + $0x80] sm:$0xf]
    %v380 = vld [vmem:[#allocation7 + $0x84] sm:$0xff]
    %v381 = vld [vmem:[#allocation7 + $0x8c] sm:$0xf]
    %v382 = vld [vmem:[#allocation7 + $0x90] sm:$0xff]
    %v383 = vld [vmem:[#allocation7 + $0x98] sm:$0xf]
    %v384 = vld [vmem:[#allocation7 + $0x9c] sm:$0xff]
    %v385 = vld [vmem:[#allocation7 + $0xa4] sm:$0xf]
    %v386 = vld [vmem:[#allocation7 + $0xa8] sm:$0xff]
    %v387 = vld [vmem:[#allocation7 + $0xb0] sm:$0xf]
    %v388 = vld [vmem:[#allocation7 + $0xb4] sm:$0xff]
    %v389 = vld [vmem:[#allocation7 + $0xbc] sm:$0xf]
    %v390 = vunpack.c.l.bf16 %v358
    %v391 = vunpack.c.h.bf16 %v358
    %v392 = vunpack.c.l.bf16 %v359
    %v393 = vunpack.c.l.bf16 %v360
    %v394 = vunpack.c.h.bf16 %v360
    %v395 = vunpack.c.l.bf16 %v361
    %v396 = vunpack.c.l.bf16 %v362
    %v397 = vunpack.c.h.bf16 %v362
    %v398 = vunpack.c.l.bf16 %v363
    %v399 = vunpack.c.l.bf16 %v364
    %v400 = vunpack.c.h.bf16 %v364
    %v401 = vunpack.c.l.bf16 %v365
    %v402 = vunpack.c.l.bf16 %v366
    %v403 = vunpack.c.h.bf16 %v366
    %v404 = vunpack.c.l.bf16 %v367
    %v405 = vunpack.c.l.bf16 %v368
    %v406 = vunpack.c.h.bf16 %v368
    %v407 = vunpack.c.l.bf16 %v369
    %v408 = vunpack.c.l.bf16 %v370
    %v409 = vunpack.c.h.bf16 %v370
    %v410 = vunpack.c.l.bf16 %v371
    %v411 = vunpack.c.l.bf16 %v372
    %v412 = vunpack.c.h.bf16 %v372
    %v413 = vunpack.c.l.bf16 %v373
    %v414 = vunpack.c.l.bf16 %v374
    %v415 = vunpack.c.h.bf16 %v374
    %v416 = vunpack.c.l.bf16 %v375
    %v417 = vunpack.c.l.bf16 %v376
    %v418 = vunpack.c.h.bf16 %v376
    %v419 = vunpack.c.l.bf16 %v377
    %v420 = vunpack.c.l.bf16 %v378
    %v421 = vunpack.c.h.bf16 %v378
    %v422 = vunpack.c.l.bf16 %v379
    %v423 = vunpack.c.l.bf16 %v380
    %v424 = vunpack.c.h.bf16 %v380
    %v425 = vunpack.c.l.bf16 %v381
    %v426 = vunpack.c.l.bf16 %v382
    %v427 = vunpack.c.h.bf16 %v382
    %v428 = vunpack.c.l.bf16 %v383
    %v429 = vunpack.c.l.bf16 %v384
    %v430 = vunpack.c.h.bf16 %v384
    %v431 = vunpack.c.l.bf16 %v385
    %v432 = vunpack.c.l.bf16 %v386
    %v433 = vunpack.c.h.bf16 %v386
    %v434 = vunpack.c.l.bf16 %v387
    %v435 = vunpack.c.l.bf16 %v388
    %v436 = vunpack.c.h.bf16 %v388
    %v437 = vunpack.c.l.bf16 %v389
    %v438 = vld [vmem:[%s9] sm:$0x7]
    %v440 = vperm.slane %v438, 0
    %v441 = vperm.slane %v438, 1
    %v442 = vperm.slane %v438, 2
    %446 = vmatpush.msra.mxu0 %v435
    %447 = vmatpush.msra.mxu0 %v432
    %448 = vmatpush.msra.mxu0 %v429
    %449 = vmatpush.msra.mxu0 %v426
    %450 = vmatpush.msra.mxu0 %v423
    %451 = vmatpush.msra.mxu0 %v420
    %452 = vmatpush.msra.mxu0 %v417
    %453 = vmatpush.msra.mxu0 %v414
    %454 = vmatpush.msra.mxu0 %v411
    %455 = vmatpush.msra.mxu0 %v408
    %456 = vmatpush.msra.mxu0 %v405
    %457 = vmatpush.msra.mxu0 %v402
    %458 = vmatpush.msra.mxu0 %v399
    %459 = vmatpush.msra.mxu0 %v396
    %460 = vmatpush.msra.mxu0 %v393
    %461 = vmatpush.msra.mxu0 %v390
    %462 = vmatmul.f32.gmra.mxu0 %v100
    %v463 = vpop.f32.mrf.mxu0
    %v464 = vadd.f32 %v440, %v463
    %465 = vdwg.mxu0
    %466 = vmatpush.msra.mxu0 %v436
    %467 = vmatpush.msra.mxu0 %v433
    %468 = vmatpush.msra.mxu0 %v430
    %469 = vmatpush.msra.mxu0 %v427
    %470 = vmatpush.msra.mxu0 %v424
    %471 = vmatpush.msra.mxu0 %v421
    %472 = vmatpush.msra.mxu0 %v418
    %473 = vmatpush.msra.mxu0 %v415
    %474 = vmatpush.msra.mxu0 %v412
    %475 = vmatpush.msra.mxu0 %v409
    %476 = vmatpush.msra.mxu0 %v406
    %477 = vmatpush.msra.mxu0 %v403
    %478 = vmatpush.msra.mxu0 %v400
    %479 = vmatpush.msra.mxu0 %v397
    %480 = vmatpush.msra.mxu0 %v394
    %481 = vmatpush.msra.mxu0 %v391
    %482 = vmatmul.f32.gmra.mxu0 %v100
    %v483 = vpop.f32.mrf.mxu0
    %v484 = vadd.f32 %v441, %v483
    %485 = vdwg.mxu0
    %486 = vmatpush.msra.mxu0 %v437
    %487 = vmatpush.msra.mxu0 %v434
    %488 = vmatpush.msra.mxu0 %v431
    %489 = vmatpush.msra.mxu0 %v428
    %490 = vmatpush.msra.mxu0 %v425
    %491 = vmatpush.msra.mxu0 %v422
    %492 = vmatpush.msra.mxu0 %v419
    %493 = vmatpush.msra.mxu0 %v416
    %494 = vmatpush.msra.mxu0 %v413
    %495 = vmatpush.msra.mxu0 %v410
    %496 = vmatpush.msra.mxu0 %v407
    %497 = vmatpush.msra.mxu0 %v404
    %498 = vmatpush.msra.mxu0 %v401
    %499 = vmatpush.msra.mxu0 %v398
    %500 = vmatpush.msra.mxu0 %v395
    %501 = vmatpush.msra.mxu0 %v392
    %502 = vmatmul.f32.gmra.mxu0 %v100
    %v503 = vpop.f32.mrf.mxu0
    %v504 = vadd.f32 %v442, %v503
    %505 = vdwg.mxu0
    %v506 = vadd.f32 %v316, %v464
    %v507 = vxor.u32 %v506, 2147483648
    %v508 = vmul.f32 %v507, 1.442695
    %v509 = vpow.pop %v508
    %v510 = vadd.f32 %v509, 1.0
    %v511 = vrcp.pop %v510
    %v512 = vmul.f32 %v510, %v511
    %v513 = vsub.f32 1.0, %v512
    %v514 = vmul.f32 %v511, %v513
    %v515 = vadd.f32 %v511, %v514
    %vm516 = vweird.f32 %v510
    %vm517 = vweird.f32 %v511
    %vm518 = vmor %vm516, %vm517
    %v519 = vsel %vm518, %v511, %v515
    %v520 = vand.u32 2147483647, %v510
    %vm521 = vcmp.eq.f32.partialorder %v520, 8.507059e+37
    %v522 = vand.u32 %v510, 2147483648
    %v523 = vor.u32 1.1754944e-38, %v522
    %v524 = vsel %vm521, %v523, %v519
    %v525 = vmul.f32 1.0, %v524
    %v526 = vadd.f32 %v336, %v484
    %v527 = vxor.u32 %v526, 2147483648
    %v528 = vmul.f32 %v527, 1.442695
    %v529 = vpow.pop %v528
    %v530 = vadd.f32 %v529, 1.0
    %v531 = vrcp.pop %v530
    %v532 = vmul.f32 %v530, %v531
    %v533 = vsub.f32 1.0, %v532
    %v534 = vmul.f32 %v531, %v533
    %v535 = vadd.f32 %v531, %v534
    %vm536 = vweird.f32 %v530
    %vm537 = vweird.f32 %v531
    %vm538 = vmor %vm536, %vm537
    %v539 = vsel %vm538, %v531, %v535
    %v540 = vand.u32 2147483647, %v530
    %vm541 = vcmp.eq.f32.partialorder %v540, 8.507059e+37
    %v542 = vand.u32 %v530, 2147483648
    %v543 = vor.u32 1.1754944e-38, %v542
    %v544 = vsel %vm541, %v543, %v539
    %v545 = vmul.f32 1.0, %v544
    %v546 = vmul.f32 %v525, %v504
    %v547 = vadd.f32 %v356, %v546
    %v548 = vtanh.pop %v547
    %v549 = vsub.f32 1.0, %v545
    %v550 = vmul.f32 %v549, %v548
    %v551 = vmul.f32 %v545, %v100
    %v552 = vadd.f32 %v550, %v551
    %553 = vst [vmem:[%s10] sm:$0xff] %v552
    // Predicated region
    $region58: #{ans_qns_ans_forward.2} parent=1 // pred_check
      _
    $region59: #{ans_qns_ans_forward.2} parent=1 // pred_check_branch
      %555 = sbr.rel (0) target = $region61
    $region60: #{ans_qns_ans_forward.2} parent=1 // pred_region
      _
    $region61: #{ans_qns_ans_forward.2} parent=1 // pred_fallthru
      _
    // Predicated region
    $region62: #{ans_qns_ans_forward.2} parent=1 // pred_check
      _
    $region63: #{ans_qns_ans_forward.2} parent=1 // pred_check_branch
      %557 = sbr.rel (0) target = $region65
    $region64: #{ans_qns_ans_forward.2} parent=1 // pred_region
      _
    $region65: #{ans_qns_ans_forward.2} parent=1 // pred_fallthru
      _
    %558 = vsyncpa [#allocation3], 1
    %559 = vsyncpa [#allocation5], 1
    %560 = vsyncpa [#allocation8], 1

</llo_original>
